<compile_context>
chip_gen: v5e
topology: v5e:2x2
jax: 0.10.0
libtpu: 0.0.40
codegen_flags: <defaults>
</compile_context>

<pallas_src>
import jax
import jax.numpy as jnp
from jax.experimental import pallas as pl
from jax.experimental.pallas import tpu as pltpu


def _pick_batch_block(B):
    """Full batch per block unless B is large; keep blocks divisor-aligned."""
    if B <= 1024:
        return B
    for cand in (1024, 512, 256, 128, 64, 32, 16, 8):
        if B % cand == 0:
            return cand
    return B


def dmm_forward(Z, params, *, mxu_dtype=jnp.bfloat16):
    """Z: (T, B, dz) float32. Returns {'mu_prior','std_prior'}: (T, B, dz) f32."""
    T, B, dz = Z.shape
    H = params["w1_g"].shape[1]

    # ---- fuse weights (wrapper side; tiny one-time copies) -----------------
    # Stage 1: everything that consumes z_prev -> one (dz, 2H+dz) weight.
    W1 = jnp.concatenate([params["w1_g"], params["w1_p"], params["w_mu"]], axis=1)
    b1 = jnp.concatenate([params["b1_g"], params["b1_p"], params["b_mu"]], axis=1)
    # Stage 2: block-diagonal (2H, 2dz): [relu(g_h) | relu(p_h)] @ W2 = [g_pre | h_t]
    W2 = jnp.zeros((2 * H, 2 * dz), jnp.float32)
    W2 = W2.at[:H, :dz].set(params["w2_g"]).at[H:, dz:].set(params["w2_p"])
    b2 = jnp.concatenate([params["b2_g"], params["b2_p"]], axis=1)
    Wsig, bsig = params["w_sig"], params["b_sig"]
    z_init = params["z_init"]

    W1c = W1.astype(mxu_dtype)
    W2c = W2.astype(mxu_dtype)
    Wsigc = Wsig.astype(mxu_dtype)

    n1 = 2 * H + dz
    n2 = 2 * dz
    RB = _pick_batch_block(B)
    nb = pl.cdiv(B, RB)
    grid = (T, nb)
    # TODO(synk): for tiny B and huge T the per-grid-step overhead (~0.35us)
    # dominates; an element-offset index_map packing many timesteps per block
    # would amortize it, at the cost of unaligned-row DMA handling.

    def kernel(zi_ref, z_ref, w1_ref, b1_ref, w2_ref, b2_ref, ws_ref, bs_ref,
               mu_ref, std_ref):
        t = pl.program_id(0)
        # BlockSpec already points at timestep max(t-1, 0); patch t == 0 rows
        # with z_init via a vector select (no HBM copy of the shifted tensor).
        z_rows = z_ref[0]                                        # (RB, dz) f32
        z0 = jnp.broadcast_to(zi_ref[...], z_rows.shape)
        z_prev = jnp.where(t == 0, z0, z_rows)
        zb = z_prev.astype(w1_ref.dtype)                         # in-kernel cast

        # Stage 1: one wide MXU push (gating-L1 | proposed-mean-L1 | mu_net).
        a1 = jnp.dot(zb, w1_ref[...],
                     preferred_element_type=jnp.float32) + b1_ref[...]
        hid = jnp.maximum(a1[:, :2 * H], 0.0)        # relu(g_h) | relu(p_h)
        mu_lin = a1[:, 2 * H:]                       # mu_net(z_prev)

        # Stage 2: block-diagonal push -> [pre-sigmoid g_t | h_t].
        a2 = jnp.dot(hid.astype(w2_ref.dtype), w2_ref[...],
                     preferred_element_type=jnp.float32) + b2_ref[...]
        g_t = jax.nn.sigmoid(a2[:, :dz])
        h_t = a2[:, dz:]
        mu_t = (1.0 - g_t) * mu_lin + g_t * h_t

        # Stage 3: sigma_net (ReLU -> Linear -> Softplus).
        s = jnp.dot(jnp.maximum(h_t, 0.0).astype(ws_ref.dtype), ws_ref[...],
                    preferred_element_type=jnp.float32) + bs_ref[...]
        std_t = jax.nn.softplus(s)

        # Final-layout stores: no fused slab, no zero pad, no tail concat.
        mu_ref[0] = mu_t
        std_ref[0] = std_t

    const = lambda shape: pl.BlockSpec(shape, lambda t, b: (0, 0))
    grid_spec = pltpu.PrefetchScalarGridSpec(
        num_scalar_prefetch=0,
        grid=grid,
        in_specs=[
            const((1, dz)),                                             # z_init
            pl.BlockSpec((1, RB, dz),
                         lambda t, b: (jnp.maximum(t - 1, 0), b, 0)),   # Z shifted
            const((dz, n1)), const((1, n1)),                            # stage-1 W,b
            const((2 * H, n2)), const((1, n2)),                         # stage-2 W,b
            const((dz, dz)), const((1, dz)),                            # sigma W,b
        ],
        out_specs=[
            pl.BlockSpec((1, RB, dz), lambda t, b: (t, b, 0)),          # mu
            pl.BlockSpec((1, RB, dz), lambda t, b: (t, b, 0)),          # std
        ],
    )

    w_itemsize = jnp.dtype(mxu_dtype).itemsize
    rows = T * B
    flops = 2 * rows * (dz * n1 + 2 * H * n2 + dz * dz)
    bytes_accessed = (rows * dz * 4                                   # Z read (f32)
                      + dz * 4                                        # z_init
                      + (dz * n1 + 2 * H * n2 + dz * dz) * w_itemsize # weights
                      + (n1 + n2 + dz) * 4                            # biases
                      + 2 * rows * dz * 4)                            # mu + std out
    cost = pl.CostEstimate(flops=flops,
                           transcendentals=4 * rows * dz,   # sigmoid~2 + softplus~2
                           bytes_accessed=bytes_accessed)

    mu, std = pl.pallas_call(
        kernel,
        out_shape=(jax.ShapeDtypeStruct((T, B, dz), jnp.float32),
                   jax.ShapeDtypeStruct((T, B, dz), jnp.float32)),
        grid_spec=grid_spec,
        compiler_params=pltpu.CompilerParams(
            dimension_semantics=("parallel", "parallel")),
        cost_estimate=cost,
    )(z_init, Z, W1c, b1, W2c, b2, Wsigc, bsig)

    return {"mu_prior": mu, "std_prior": std}


def init_params(key, latent_sz, transition_hidden_sz):
    """Deterministic synthetic parameter init (shapes match the PyTorch module)."""
    dz, H = latent_sz, transition_hidden_sz
    ks = jax.random.split(key, 12)
    scale = 0.1
    return {
        # gating_unit: Linear(dz->H), Linear(H->dz)
        "w1_g": scale * jax.random.normal(ks[0], (dz, H), jnp.float32),
        "b1_g": scale * jax.random.normal(ks[1], (1, H), jnp.float32),
        "w2_g": scale * jax.random.normal(ks[2], (H, dz), jnp.float32),
        "b2_g": scale * jax.random.normal(ks[3], (1, dz), jnp.float32),
        # proposed_mean: Linear(dz->H), Linear(H->dz)
        "w1_p": scale * jax.random.normal(ks[4], (dz, H), jnp.float32),
        "b1_p": scale * jax.random.normal(ks[5], (1, H), jnp.float32),
        "w2_p": scale * jax.random.normal(ks[6], (H, dz), jnp.float32),
        "b2_p": scale * jax.random.normal(ks[7], (1, dz), jnp.float32),
        # mu_net: Linear(dz->dz)
        "w_mu": scale * jax.random.normal(ks[8], (dz, dz), jnp.float32),
        "b_mu": scale * jax.random.normal(ks[9], (1, dz), jnp.float32),
        # sigma_net: Linear(dz->dz)
        "w_sig": scale * jax.random.normal(ks[10], (dz, dz), jnp.float32),
        "b_sig": scale * jax.random.normal(ks[11], (1, dz), jnp.float32),
        # z_init: Parameter(1, dz) initialized to zeros, as in the module
        "z_init": jnp.zeros((1, dz), jnp.float32),
    }


def dmm_forward_ref(Z, params):
    """Pure-JAX f32 reference (mirrors the PyTorch forward)."""
    T, B, dz = Z.shape
    z0 = jnp.broadcast_to(params["z_init"], (1, B, dz))
    Zprev = jnp.concatenate([z0, Z[:-1]], axis=0)

    def step(z_prev):
        g = jax.nn.sigmoid(
            jnp.maximum(z_prev @ params["w1_g"] + params["b1_g"], 0.0)
            @ params["w2_g"] + params["b2_g"])
        h = (jnp.maximum(z_prev @ params["w1_p"] + params["b1_p"], 0.0)
             @ params["w2_p"] + params["b2_p"])
        mu = (1.0 - g) * (z_prev @ params["w_mu"] + params["b_mu"]) + g * h
        std = jax.nn.softplus(jnp.maximum(h, 0.0) @ params["w_sig"] + params["b_sig"])
        return mu, std

    mu, std = jax.vmap(step)(Zprev)
    return {"mu_prior": mu, "std_prior": std}


if __name__ == "__main__":
    latent_sz = 32
    emission_hidden_sz = 32       # unused in forward (kept for signature parity)
    transition_hidden_sz = 32
    T, B = 8, 2

    key = jax.random.PRNGKey(0)
    k_param, k_z = jax.random.split(key)
    params = init_params(k_param, latent_sz, transition_hidden_sz)
    Z = jax.random.normal(k_z, (T, B, latent_sz), jnp.float32)

    ref = dmm_forward_ref(Z, params)

    # f32-MXU path: exact semantics check.
    out_f32 = dmm_forward(Z, params, mxu_dtype=jnp.float32)
    jax.block_until_ready(out_f32)
    assert jnp.allclose(out_f32["mu_prior"], ref["mu_prior"], atol=1e-5, rtol=1e-5)
    assert jnp.allclose(out_f32["std_prior"], ref["std_prior"], atol=1e-5, rtol=1e-5)

    # bf16-MXU path (default / fast): loose tolerance for bf16 operand rounding.
    out = dmm_forward(Z, params)
    jax.block_until_ready(out)
    assert out["mu_prior"].shape == (T, B, latent_sz)
    assert out["std_prior"].shape == (T, B, latent_sz)
    assert jnp.allclose(out["mu_prior"], ref["mu_prior"], atol=3e-2, rtol=3e-2)
    assert jnp.allclose(out["std_prior"], ref["std_prior"], atol=3e-2, rtol=3e-2)

    print("KERNEL_OK")
</pallas_src>

<mosaic_0001>
module attributes {stable_mosaic.version = 11 : i64} {
  func.func @kernel(%arg0: i32, %arg1: i32, %arg2: memref<1x32xf32, #tpu.memory_space<vmem>>, %arg3: memref<1x2x32xf32, #tpu.memory_space<vmem>>, %arg4: memref<32x96xf32, #tpu.memory_space<vmem>>, %arg5: memref<1x96xf32, #tpu.memory_space<vmem>>, %arg6: memref<64x64xf32, #tpu.memory_space<vmem>>, %arg7: memref<1x64xf32, #tpu.memory_space<vmem>>, %arg8: memref<32x32xf32, #tpu.memory_space<vmem>>, %arg9: memref<1x32xf32, #tpu.memory_space<vmem>>, %arg10: memref<1x2x32xf32, #tpu.memory_space<vmem>>, %arg11: memref<1x2x32xf32, #tpu.memory_space<vmem>>) attributes {dimension_semantics = [#tpu.dimension_semantics<parallel>, #tpu.dimension_semantics<parallel>], iteration_bounds = array<i64: 8, 1>, scalar_prefetch = 0 : i64, scratch_operands = 0 : i64, tpu.core_type = #tpu.core_type<tc>, window_params = [{pipeline_mode = #tpu.pipeline_mode<synchronous>, transform_indices = @transform_0, window_bounds = array<i64: 1, 32>}, {transform_indices = @transform_1, window_bounds = array<i64: 1, 2, 32>}, {pipeline_mode = #tpu.pipeline_mode<synchronous>, transform_indices = @transform_2, window_bounds = array<i64: 32, 96>}, {pipeline_mode = #tpu.pipeline_mode<synchronous>, transform_indices = @transform_3, window_bounds = array<i64: 1, 96>}, {pipeline_mode = #tpu.pipeline_mode<synchronous>, transform_indices = @transform_4, window_bounds = array<i64: 64, 64>}, {pipeline_mode = #tpu.pipeline_mode<synchronous>, transform_indices = @transform_5, window_bounds = array<i64: 1, 64>}, {pipeline_mode = #tpu.pipeline_mode<synchronous>, transform_indices = @transform_6, window_bounds = array<i64: 32, 32>}, {pipeline_mode = #tpu.pipeline_mode<synchronous>, transform_indices = @transform_7, window_bounds = array<i64: 1, 32>}, {transform_indices = @transform_8, window_bounds = array<i64: 1, 2, 32>}, {transform_indices = @transform_9, window_bounds = array<i64: 1, 2, 32>}]} {
    %c0 = arith.constant 0 : index
    %c0_0 = arith.constant 0 : index
    %c0_1 = arith.constant 0 : index
    %0 = vector.load %arg3[%c0, %c0_0, %c0_1] : memref<1x2x32xf32, #tpu.memory_space<vmem>>, vector<1x2x32xf32>
    %1 = vector.shape_cast %0 : vector<1x2x32xf32> to vector<2x32xf32>
    %c0_2 = arith.constant 0 : index
    %c0_3 = arith.constant 0 : index
    %2 = vector.load %arg2[%c0_2, %c0_3] : memref<1x32xf32, #tpu.memory_space<vmem>>, vector<1x32xf32>
    %3 = vector.shape_cast %2 : vector<1x32xf32> to vector<1x32xf32>
    %4 = vector.broadcast %3 : vector<1x32xf32> to vector<2x32xf32>
    %c0_i32 = arith.constant 0 : i32
    %5 = arith.cmpi eq, %arg0, %c0_i32 : i32
    %6 = arith.select %5, %4, %1 : vector<2x32xf32>
    %c0_4 = arith.constant 0 : index
    %c0_5 = arith.constant 0 : index
    %7 = vector.load %arg4[%c0_4, %c0_5] : memref<32x96xf32, #tpu.memory_space<vmem>>, vector<32x96xf32>
    %cst = arith.constant dense<0.000000e+00> : vector<2x96xf32>
    %8 = tpu.matmul %6, %7, %cst {dimension_numbers = #tpu.dot_dimension_numbers<[1], [0], [0], [1], [0, 0, 1, 1], [], []>} : vector<2x32xf32>, vector<32x96xf32>, vector<2x96xf32> -> vector<2x96xf32>
    %c0_6 = arith.constant 0 : index
    %c0_7 = arith.constant 0 : index
    %9 = vector.load %arg5[%c0_6, %c0_7] : memref<1x96xf32, #tpu.memory_space<vmem>>, vector<1x96xf32>
    %10 = vector.broadcast %9 : vector<1x96xf32> to vector<2x96xf32>
    %11 = arith.addf %8, %10 : vector<2x96xf32>
    %12 = vector.extract_strided_slice %11 {offsets = [0, 0], sizes = [2, 64], strides = [1, 1]} : vector<2x96xf32> to vector<2x64xf32>
    %cst_8 = arith.constant 0.000000e+00 : f32
    %13 = vector.broadcast %cst_8 : f32 to vector<2x64xf32>
    %14 = arith.maximumf %12, %13 : vector<2x64xf32>
    %15 = vector.extract_strided_slice %11 {offsets = [0, 64], sizes = [2, 32], strides = [1, 1]} : vector<2x96xf32> to vector<2x32xf32>
    %c0_9 = arith.constant 0 : index
    %c0_10 = arith.constant 0 : index
    %16 = vector.load %arg6[%c0_9, %c0_10] : memref<64x64xf32, #tpu.memory_space<vmem>>, vector<64x64xf32>
    %cst_11 = arith.constant dense<0.000000e+00> : vector<2x64xf32>
    %17 = tpu.matmul %14, %16, %cst_11 {dimension_numbers = #tpu.dot_dimension_numbers<[1], [0], [0], [1], [0, 0, 1, 1], [], []>} : vector<2x64xf32>, vector<64x64xf32>, vector<2x64xf32> -> vector<2x64xf32>
    %c0_12 = arith.constant 0 : index
    %c0_13 = arith.constant 0 : index
    %18 = vector.load %arg7[%c0_12, %c0_13] : memref<1x64xf32, #tpu.memory_space<vmem>>, vector<1x64xf32>
    %19 = vector.broadcast %18 : vector<1x64xf32> to vector<2x64xf32>
    %20 = arith.addf %17, %19 : vector<2x64xf32>
    %21 = vector.extract_strided_slice %20 {offsets = [0, 0], sizes = [2, 32], strides = [1, 1]} : vector<2x64xf32> to vector<2x32xf32>
    %22 = arith.negf %21 : vector<2x32xf32>
    %23 = math.exp %22 : vector<2x32xf32>
    %cst_14 = arith.constant 1.000000e+00 : f32
    %24 = vector.broadcast %cst_14 : f32 to vector<2x32xf32>
    %25 = arith.addf %24, %23 : vector<2x32xf32>
    %26 = arith.divf %24, %25 : vector<2x32xf32>
    %27 = vector.extract_strided_slice %20 {offsets = [0, 32], sizes = [2, 32], strides = [1, 1]} : vector<2x64xf32> to vector<2x32xf32>
    %cst_15 = arith.constant 1.000000e+00 : f32
    %28 = vector.broadcast %cst_15 : f32 to vector<2x32xf32>
    %29 = arith.subf %28, %26 : vector<2x32xf32>
    %30 = arith.mulf %29, %15 : vector<2x32xf32>
    %31 = arith.mulf %26, %27 : vector<2x32xf32>
    %32 = arith.addf %30, %31 : vector<2x32xf32>
    %cst_16 = arith.constant 0.000000e+00 : f32
    %33 = vector.broadcast %cst_16 : f32 to vector<2x32xf32>
    %34 = arith.maximumf %27, %33 : vector<2x32xf32>
    %c0_17 = arith.constant 0 : index
    %c0_18 = arith.constant 0 : index
    %35 = vector.load %arg8[%c0_17, %c0_18] : memref<32x32xf32, #tpu.memory_space<vmem>>, vector<32x32xf32>
    %cst_19 = arith.constant dense<0.000000e+00> : vector<2x32xf32>
    %36 = tpu.matmul %34, %35, %cst_19 {dimension_numbers = #tpu.dot_dimension_numbers<[1], [0], [0], [1], [0, 0, 1, 1], [], []>} : vector<2x32xf32>, vector<32x32xf32>, vector<2x32xf32> -> vector<2x32xf32>
    %c0_20 = arith.constant 0 : index
    %c0_21 = arith.constant 0 : index
    %37 = vector.load %arg9[%c0_20, %c0_21] : memref<1x32xf32, #tpu.memory_space<vmem>>, vector<1x32xf32>
    %38 = vector.broadcast %37 : vector<1x32xf32> to vector<2x32xf32>
    %39 = arith.addf %36, %38 : vector<2x32xf32>
    %cst_22 = arith.constant 0.000000e+00 : f32
    %40 = vector.broadcast %cst_22 : f32 to vector<2x32xf32>
    %41 = arith.maximumf %39, %40 : vector<2x32xf32>
    %42 = vector.broadcast %cst_22 : f32 to vector<2x32xf32>
    %43 = arith.subf %39, %42 : vector<2x32xf32>
    %44 = arith.cmpf one, %43, %43 : vector<2x32xf32>
    %45 = vector.broadcast %cst_22 : f32 to vector<2x32xf32>
    %46 = arith.addf %39, %45 : vector<2x32xf32>
    %47 = math.absf %43 : vector<2x32xf32>
    %cst_23 = arith.constant 0.000000e+00 : f32
    %48 = vector.broadcast %cst_23 : f32 to vector<2x32xf32>
    %49 = arith.subf %48, %47 : vector<2x32xf32>
    %50 = math.exp %49 : vector<2x32xf32>
    %51 = math.log1p %50 : vector<2x32xf32>
    %52 = arith.addf %41, %51 : vector<2x32xf32>
    %53 = arith.select %44, %46, %52 : vector<2x32xi1>, vector<2x32xf32>
    %c0_24 = arith.constant 0 : index
    %c0_25 = arith.constant 0 : index
    %c0_26 = arith.constant 0 : index
    %54 = vector.load %arg10[%c0_24, %c0_25, %c0_26] : memref<1x2x32xf32, #tpu.memory_space<vmem>>, vector<1x2x32xf32>
    %55 = vector.shape_cast %54 : vector<1x2x32xf32> to vector<2x32xf32>
    %56 = vector.shape_cast %32 : vector<2x32xf32> to vector<1x2x32xf32>
    tpu.vector_store %arg10[%c0_24, %c0_25, %c0_26], %56 {strides = array<i32>} : memref<1x2x32xf32, #tpu.memory_space<vmem>>, vector<1x2x32xf32>,
    %c0_27 = arith.constant 0 : index
    %c0_28 = arith.constant 0 : index
    %c0_29 = arith.constant 0 : index
    %57 = vector.load %arg11[%c0_27, %c0_28, %c0_29] : memref<1x2x32xf32, #tpu.memory_space<vmem>>, vector<1x2x32xf32>
    %58 = vector.shape_cast %57 : vector<1x2x32xf32> to vector<2x32xf32>
    %59 = vector.shape_cast %53 : vector<2x32xf32> to vector<1x2x32xf32>
    tpu.vector_store %arg11[%c0_27, %c0_28, %c0_29], %59 {strides = array<i32>} : memref<1x2x32xf32, #tpu.memory_space<vmem>>, vector<1x2x32xf32>,
    return
  }
  func.func @transform_0(%arg0: i32, %arg1: i32) -> (i32, i32) {
    %c0_i32 = arith.constant 0 : i32
    %c0_i32_0 = arith.constant 0 : i32
    %c0_i32_1 = arith.constant 0 : i32
    return %c0_i32, %c0_i32_0 : i32, i32
  }
  func.func @transform_1(%arg0: i32, %arg1: i32) -> (i32, i32, i32) {
    %c1_i32 = arith.constant 1 : i32
    %0 = arith.subi %arg0, %c1_i32 : i32
    %c0_i32 = arith.constant 0 : i32
    %1 = arith.maxsi %0, %c0_i32 : i32
    %c0_i32_0 = arith.constant 0 : i32
    %c0_i32_1 = arith.constant 0 : i32
    return %1, %arg1, %c0_i32_0 : i32, i32, i32
  }
  func.func @transform_2(%arg0: i32, %arg1: i32) -> (i32, i32) {
    %c0_i32 = arith.constant 0 : i32
    %c0_i32_0 = arith.constant 0 : i32
    %c0_i32_1 = arith.constant 0 : i32
    return %c0_i32, %c0_i32_0 : i32, i32
  }
  func.func @transform_3(%arg0: i32, %arg1: i32) -> (i32, i32) {
    %c0_i32 = arith.constant 0 : i32
    %c0_i32_0 = arith.constant 0 : i32
    %c0_i32_1 = arith.constant 0 : i32
    return %c0_i32, %c0_i32_0 : i32, i32
  }
  func.func @transform_4(%arg0: i32, %arg1: i32) -> (i32, i32) {
    %c0_i32 = arith.constant 0 : i32
    %c0_i32_0 = arith.constant 0 : i32
    %c0_i32_1 = arith.constant 0 : i32
    return %c0_i32, %c0_i32_0 : i32, i32
  }
  func.func @transform_5(%arg0: i32, %arg1: i32) -> (i32, i32) {
    %c0_i32 = arith.constant 0 : i32
    %c0_i32_0 = arith.constant 0 : i32
    %c0_i32_1 = arith.constant 0 : i32
    return %c0_i32, %c0_i32_0 : i32, i32
  }
  func.func @transform_6(%arg0: i32, %arg1: i32) -> (i32, i32) {
    %c0_i32 = arith.constant 0 : i32
    %c0_i32_0 = arith.constant 0 : i32
    %c0_i32_1 = arith.constant 0 : i32
    return %c0_i32, %c0_i32_0 : i32, i32
  }
  func.func @transform_7(%arg0: i32, %arg1: i32) -> (i32, i32) {
    %c0_i32 = arith.constant 0 : i32
    %c0_i32_0 = arith.constant 0 : i32
    %c0_i32_1 = arith.constant 0 : i32
    return %c0_i32, %c0_i32_0 : i32, i32
  }
  func.func @transform_8(%arg0: i32, %arg1: i32) -> (i32, i32, i32) {
    %c0_i32 = arith.constant 0 : i32
    %c0_i32_0 = arith.constant 0 : i32
    return %arg0, %arg1, %c0_i32 : i32, i32, i32
  }
  func.func @transform_9(%arg0: i32, %arg1: i32) -> (i32, i32, i32) {
    %c0_i32 = arith.constant 0 : i32
    %c0_i32_0 = arith.constant 0 : i32
    return %arg0, %arg1, %c0_i32 : i32, i32, i32
  }
}

</mosaic_0001>

<llo_original>
// kernel: tpu_custom_call.1
$region0: #{tpu_custom_call.1}
  #allocation0 [shape = 'u32[]', space=smem, size = 0x4, offset = 0x4, fixed_abs, tag = 'smem constant byte address 0x4 - core index']
  #allocation1 [shape = 'u32[72,128]{1,0:T(1,128)}', space=vmem, size = 0x9000, scoped, tag = 'internal scratch']
  %s0 = inlined_call_operand.hbm [shape: f32[1,32], index: 0, kind: input, shape index: {}]
  %s1 = inlined_call_operand.hbm [shape: f32[8,2,32], index: 1, kind: input, shape index: {}]
  %s2 = inlined_call_operand.hbm [shape: f32[32,96], index: 2, kind: input, shape index: {}]
  %s3 = inlined_call_operand.vmem [shape: f32[1,96], index: 3, kind: input, shape index: {}]
  %s4 = inlined_call_operand.hbm [shape: f32[64,64], index: 4, kind: input, shape index: {}]
  %s5 = inlined_call_operand.vmem [shape: f32[1,64], index: 5, kind: input, shape index: {}]
  %s6 = inlined_call_operand.hbm [shape: f32[32,32], index: 6, kind: input, shape index: {}]
  %s7 = inlined_call_operand.vmem [shape: f32[1,32], index: 7, kind: input, shape index: {}]
  %s8 = inlined_call_operand.hbm [shape: f32[8,2,32], index: 8, kind: output, shape index: {0}]
  %s9 = inlined_call_operand.hbm [shape: f32[8,2,32], index: 9, kind: output, shape index: {1}]
  %10 = xla_tuple %s8, %s9
  %s11 = sld [smem:[#allocation0]]
  $region93: #{tpu_custom_call.1} parent=0
    _
  %s13 = ssub.s32 1, %s11
  %s14 = scalar_select 0, %s13, %s11
  $region1: #{tpu_custom_call.1} parent=0
    #allocation2 [shape = 'u8[512]{0}', space=vmem, size = 0x400, scoped, tag = 'input window, operand 0, single buffered']
    #allocation3 [shape = 's32[2]{0}', space=sflag, size = 0x8, scoped, tag = 'scoped memory for tpu_custom_call.1']
    #allocation4 [shape = 's32[2]{0}', space=sflag, size = 0x8, scoped, tag = 'scoped memory for tpu_custom_call.1']
    #allocation5 [shape = 'u8[2048]{0}', space=vmem, size = 0x800, scoped, tag = 'input window, operand 1']
    #allocation6 [shape = 's32[2]{0}', space=sflag, size = 0x8, scoped, tag = 'scoped memory for tpu_custom_call.1']
    #allocation7 [shape = 'u8[16384]{0}', space=vmem, size = 0x4000, scoped, tag = 'input window, operand 2, single buffered']
    #allocation8 [shape = 'u8[32768]{0}', space=vmem, size = 0x8000, scoped, tag = 'input window, operand 4, single buffered']
    #allocation9 [shape = 's32[1]{0}', space=sflag, size = 0x4, scoped, tag = 'scoped memory for tpu_custom_call.1']
    #allocation10 [shape = 'u8[16384]{0}', space=vmem, size = 0x4000, scoped, tag = 'input window, operand 6, single buffered']
    #allocation11 [shape = 'u8[2048]{0}', space=vmem, size = 0x800, scoped, tag = 'output window, operand 0']
    #allocation12 [shape = 'u8[2048]{0}', space=vmem, size = 0x800, scoped, tag = 'output window, operand 1']
    #allocation13 [shape = 's32[2]{0}', space=sflag, size = 0x8, scoped, tag = 'scoped memory for tpu_custom_call.1']
    %15 = vsyncpa [#allocation3], 0
    %16 = vsyncpa [#allocation6], 0
    %s17 = scalar_lea.sflag [#allocation6], 1
    %18 = vsyncpa %s17, 0
    %19 = vsyncpa [#allocation9], 0
    %20 = vsyncpa [#allocation4], 0
    %s21 = scalar_lea.sflag [#allocation4], 1
    %22 = vsyncpa %s21, 0
    %23 = vsyncpa [#allocation13], 0
    %s24 = scalar_lea.sflag [#allocation13], 1
    %25 = vsyncpa %s24, 0
    loop: start=0, step=1, limit=10
    $region2: #{tpu_custom_call.1} parent=1 // loop_pre_header
      _
    $region3: #{tpu_custom_call.1} parent=1 // loop_header
      %s27 = sphi 0, %s31
      %p28 = scmp.ge.s32.totalorder %s27, 10
      %s34 = sphi 0, %s46
      %s35 = sphi 0, %s42
      %s36 = sphi 0, %s34
      %s37 = sphi 0, %s35
      %s38 = sphi 0, %s36
      %s39 = sphi 0, %s37
      %s47 = sphi 0, %s47
      %s49 = sphi 0, %s47
      %s50 = sphi 0, %s49
      %s64 = sphi 0, %s50
      %s78 = sphi 0, %s80
      %s81 = sphi 0, %s78
      %s82 = sphi 0, %s81
      %s98 = sphi 0, %s82
      %s102 = sphi 0, %s102
      %s104 = sphi 0, %s102
      %s105 = sphi 0, %s104
      %s119 = sphi 0, %s105
      %s123 = sphi 0, %s123
      %s125 = sphi 0, %s123
      %s126 = sphi 0, %s125
      %s140 = sphi 0, %s126
      %s144 = sphi 0, %s144
      %s146 = sphi 0, %s144
      %s147 = sphi 0, %s146
      %s161 = sphi 0, %s147
      %s165 = sphi 0, %s165
      %s167 = sphi 0, %s165
      %s168 = sphi 0, %s167
      %s182 = sphi 0, %s168
      %s186 = sphi 0, %s186
      %s188 = sphi 0, %s186
      %s189 = sphi 0, %s188
      %s203 = sphi 0, %s189
      %s207 = sphi 0, %s207
      %s209 = sphi 0, %s207
      %s210 = sphi 0, %s209
      %s224 = sphi 0, %s210
      %s232 = sphi 0, %s234
      %s235 = sphi 0, %s232
      %s236 = sphi 0, %s235
      %s252 = sphi 0, %s236
      %s260 = sphi 0, %s262
      %s263 = sphi 0, %s260
      %s264 = sphi 0, %s263
      %s280 = sphi 0, %s264
    $region4: #{tpu_custom_call.1} parent=1 // loop_header_branch
      %30 = sbr.rel (%p28) target = $region8
    $region5: #{tpu_custom_call.1} parent=1 // loop_body
      %s32 = ssub.s32 %s27, 1
      %s33 = ssub.s32 %s27, 2
      %s40 = sadd.s32 1, %s35
      %p41 = scmp.ge.s32.totalorder %s40, 1
      %s42 = scalar_select %p41, 0, %s40
      %s43 = sadd.s32 1, %s34
      %s44 = scalar_select %p41, %s43, %s34
      %p45 = scmp.ge.s32.totalorder %s44, 8
      %s46 = scalar_select %p45, 0, %s44
      %s48 = sadd.s32 %s47, 1
      %p51 = scmp.eq.s32.totalorder %s27, 7
      %p52 = scmp.ne.s32.totalorder %s47, %s49
      %p53 = scmp.eq.s32.totalorder %s27, 0
      %p54 = por %p52, %p53
      %p55 = scmp.ne.s32.totalorder %s47, %s49
      %p56 = scmp.eq.s32.totalorder %s32, 7
      %p57 = por %p55, %p56
      %p58 = scmp.ne.s32.totalorder %s49, %s50
      %p59 = scmp.eq.s32.totalorder %s32, 0
      %p60 = por %p58, %p59
      %p61 = scmp.ne.s32.totalorder %s49, %s50
      %p62 = scmp.eq.s32.totalorder %s33, 7
      %p63 = por %p61, %p62
      %p65 = scmp.ne.s32.totalorder %s50, %s64
      %p66 = scmp.eq.s32.totalorder %s33, 0
      %p67 = por %p65, %p66
      %s68 = ssub.s32 %s34, 1
      %p69 = scmp.gt.s32.totalorder %s68, 0
      %s70 = scalar_select %p69, %s68, 0
      %s71 = ssub.s32 %s46, 1
      %p72 = scmp.gt.s32.totalorder %s71, 0
      %s73 = scalar_select %p72, %s71, 0
      %s74 = ssub.s32 %s70, %s73
      %s75 = ssub.s32 %s35, %s42
      %s76 = sor.u32 %s74, %s75
      %p77 = scmp.eq.s32.totalorder %s76, 0
      %s79 = sadd.s32 %s78, 1
      %s80 = scalar_select %p77, %s78, %s79
      %p83 = pneg %p77
      %p84 = scmp.eq.s32.totalorder %s27, 7
      %p85 = por %p83, %p84
      %p86 = scmp.ne.s32.totalorder %s78, %s81
      %p87 = scmp.eq.s32.totalorder %s27, 0
      %p88 = por %p86, %p87
      %p89 = scmp.ne.s32.totalorder %s78, %s81
      %p90 = scmp.eq.s32.totalorder %s32, 7
      %p91 = por %p89, %p90
      %p92 = scmp.ne.s32.totalorder %s81, %s82
      %p93 = scmp.eq.s32.totalorder %s32, 0
      %p94 = por %p92, %p93
      %p95 = scmp.ne.s32.totalorder %s81, %s82
      %p96 = scmp.eq.s32.totalorder %s33, 7
      %p97 = por %p95, %p96
      %p99 = scmp.ne.s32.totalorder %s82, %s98
      %p100 = scmp.eq.s32.totalorder %s33, 0
      %p101 = por %p99, %p100
      %s103 = sadd.s32 %s102, 1
      %p106 = scmp.eq.s32.totalorder %s27, 7
      %p107 = scmp.ne.s32.totalorder %s102, %s104
      %p108 = scmp.eq.s32.totalorder %s27, 0
      %p109 = por %p107, %p108
      %p110 = scmp.ne.s32.totalorder %s102, %s104
      %p111 = scmp.eq.s32.totalorder %s32, 7
      %p112 = por %p110, %p111
      %p113 = scmp.ne.s32.totalorder %s104, %s105
      %p114 = scmp.eq.s32.totalorder %s32, 0
      %p115 = por %p113, %p114
      %p116 = scmp.ne.s32.totalorder %s104, %s105
      %p117 = scmp.eq.s32.totalorder %s33, 7
      %p118 = por %p116, %p117
      %p120 = scmp.ne.s32.totalorder %s105, %s119
      %p121 = scmp.eq.s32.totalorder %s33, 0
      %p122 = por %p120, %p121
      %s124 = sadd.s32 %s123, 1
      %p127 = scmp.eq.s32.totalorder %s27, 7
      %p128 = scmp.ne.s32.totalorder %s123, %s125
      %p129 = scmp.eq.s32.totalorder %s27, 0
      %p130 = por %p128, %p129
      %p131 = scmp.ne.s32.totalorder %s123, %s125
      %p132 = scmp.eq.s32.totalorder %s32, 7
      %p133 = por %p131, %p132
      %p134 = scmp.ne.s32.totalorder %s125, %s126
      %p135 = scmp.eq.s32.totalorder %s32, 0
      %p136 = por %p134, %p135
      %p137 = scmp.ne.s32.totalorder %s125, %s126
      %p138 = scmp.eq.s32.totalorder %s33, 7
      %p139 = por %p137, %p138
      %p141 = scmp.ne.s32.totalorder %s126, %s140
      %p142 = scmp.eq.s32.totalorder %s33, 0
      %p143 = por %p141, %p142
      %s145 = sadd.s32 %s144, 1
      %p148 = scmp.eq.s32.totalorder %s27, 7
      %p149 = scmp.ne.s32.totalorder %s144, %s146
      %p150 = scmp.eq.s32.totalorder %s27, 0
      %p151 = por %p149, %p150
      %p152 = scmp.ne.s32.totalorder %s144, %s146
      %p153 = scmp.eq.s32.totalorder %s32, 7
      %p154 = por %p152, %p153
      %p155 = scmp.ne.s32.totalorder %s146, %s147
      %p156 = scmp.eq.s32.totalorder %s32, 0
      %p157 = por %p155, %p156
      %p158 = scmp.ne.s32.totalorder %s146, %s147
      %p159 = scmp.eq.s32.totalorder %s33, 7
      %p160 = por %p158, %p159
      %p162 = scmp.ne.s32.totalorder %s147, %s161
      %p163 = scmp.eq.s32.totalorder %s33, 0
      %p164 = por %p162, %p163
      %s166 = sadd.s32 %s165, 1
      %p169 = scmp.eq.s32.totalorder %s27, 7
      %p170 = scmp.ne.s32.totalorder %s165, %s167
      %p171 = scmp.eq.s32.totalorder %s27, 0
      %p172 = por %p170, %p171
      %p173 = scmp.ne.s32.totalorder %s165, %s167
      %p174 = scmp.eq.s32.totalorder %s32, 7
      %p175 = por %p173, %p174
      %p176 = scmp.ne.s32.totalorder %s167, %s168
      %p177 = scmp.eq.s32.totalorder %s32, 0
      %p178 = por %p176, %p177
      %p179 = scmp.ne.s32.totalorder %s167, %s168
      %p180 = scmp.eq.s32.totalorder %s33, 7
      %p181 = por %p179, %p180
      %p183 = scmp.ne.s32.totalorder %s168, %s182
      %p184 = scmp.eq.s32.totalorder %s33, 0
      %p185 = por %p183, %p184
      %s187 = sadd.s32 %s186, 1
      %p190 = scmp.eq.s32.totalorder %s27, 7
      %p191 = scmp.ne.s32.totalorder %s186, %s188
      %p192 = scmp.eq.s32.totalorder %s27, 0
      %p193 = por %p191, %p192
      %p194 = scmp.ne.s32.totalorder %s186, %s188
      %p195 = scmp.eq.s32.totalorder %s32, 7
      %p196 = por %p194, %p195
      %p197 = scmp.ne.s32.totalorder %s188, %s189
      %p198 = scmp.eq.s32.totalorder %s32, 0
      %p199 = por %p197, %p198
      %p200 = scmp.ne.s32.totalorder %s188, %s189
      %p201 = scmp.eq.s32.totalorder %s33, 7
      %p202 = por %p200, %p201
      %p204 = scmp.ne.s32.totalorder %s189, %s203
      %p205 = scmp.eq.s32.totalorder %s33, 0
      %p206 = por %p204, %p205
      %s208 = sadd.s32 %s207, 1
      %p211 = scmp.eq.s32.totalorder %s27, 7
      %p212 = scmp.ne.s32.totalorder %s207, %s209
      %p213 = scmp.eq.s32.totalorder %s27, 0
      %p214 = por %p212, %p213
      %p215 = scmp.ne.s32.totalorder %s207, %s209
      %p216 = scmp.eq.s32.totalorder %s32, 7
      %p217 = por %p215, %p216
      %p218 = scmp.ne.s32.totalorder %s209, %s210
      %p219 = scmp.eq.s32.totalorder %s32, 0
      %p220 = por %p218, %p219
      %p221 = scmp.ne.s32.totalorder %s209, %s210
      %p222 = scmp.eq.s32.totalorder %s33, 7
      %p223 = por %p221, %p222
      %p225 = scmp.ne.s32.totalorder %s210, %s224
      %p226 = scmp.eq.s32.totalorder %s33, 0
      %p227 = por %p225, %p226
      %s228 = ssub.s32 %s34, %s46
      %s229 = ssub.s32 %s35, %s42
      %s230 = sor.u32 %s228, %s229
      %p231 = scmp.eq.s32.totalorder %s230, 0
      %s233 = sadd.s32 %s232, 1
      %s234 = scalar_select %p231, %s232, %s233
      %p237 = pneg %p231
      %p238 = scmp.eq.s32.totalorder %s27, 7
      %p239 = por %p237, %p238
      %p240 = scmp.ne.s32.totalorder %s232, %s235
      %p241 = scmp.eq.s32.totalorder %s27, 0
      %p242 = por %p240, %p241
      %p243 = scmp.ne.s32.totalorder %s232, %s235
      %p244 = scmp.eq.s32.totalorder %s32, 7
      %p245 = por %p243, %p244
      %p246 = scmp.ne.s32.totalorder %s235, %s236
      %p247 = scmp.eq.s32.totalorder %s32, 0
      %p248 = por %p246, %p247
      %p249 = scmp.ne.s32.totalorder %s235, %s236
      %p250 = scmp.eq.s32.totalorder %s33, 7
      %p251 = por %p249, %p250
      %p253 = scmp.ne.s32.totalorder %s236, %s252
      %p254 = scmp.eq.s32.totalorder %s33, 0
      %p255 = por %p253, %p254
      %s256 = ssub.s32 %s34, %s46
      %s257 = ssub.s32 %s35, %s42
      %s258 = sor.u32 %s256, %s257
      %p259 = scmp.eq.s32.totalorder %s258, 0
      %s261 = sadd.s32 %s260, 1
      %s262 = scalar_select %p259, %s260, %s261
      %p265 = pneg %p259
      %p266 = scmp.eq.s32.totalorder %s27, 7
      %p267 = por %p265, %p266
      %p268 = scmp.ne.s32.totalorder %s260, %s263
      %p269 = scmp.eq.s32.totalorder %s27, 0
      %p270 = por %p268, %p269
      %p271 = scmp.ne.s32.totalorder %s260, %s263
      %p272 = scmp.eq.s32.totalorder %s32, 7
      %p273 = por %p271, %p272
      %p274 = scmp.ne.s32.totalorder %s263, %s264
      %p275 = scmp.eq.s32.totalorder %s32, 0
      %p276 = por %p274, %p275
      %p277 = scmp.ne.s32.totalorder %s263, %s264
      %p278 = scmp.eq.s32.totalorder %s33, 7
      %p279 = por %p277, %p278
      %p281 = scmp.ne.s32.totalorder %s264, %s280
      %p282 = scmp.eq.s32.totalorder %s33, 0
      %p283 = por %p281, %p282
      %p284 = scmp.le.s32.totalorder 1, %s27
      %p285 = scmp.lt.s32.totalorder %s27, 9
      %p286 = pnand %p284, %p285
      %p287 = pneg %p286
      // Predicated region
      $region9: #{tpu_custom_call.1} parent=5 // pred_check
        _
      $region10: #{tpu_custom_call.1} parent=5 // pred_check_branch
        %289 = sbr.rel (%p286) target = $region12
      $region11: #{tpu_custom_call.1} parent=5 // pred_region
        %s290 = ssub.s32 %s27, 1
        // Predicated region
        $region13: #{tpu_custom_call.1} parent=11 // pred_check
          %p291 = pneg %p60
        $region14: #{tpu_custom_call.1} parent=11 // pred_check_branch
          %293 = sbr.rel (%p291) target = $region16
        $region15: #{tpu_custom_call.1} parent=11 // pred_region
          %295 = vsyncadd [#allocation3], 0
          %s297 = sshll.u32 %s0, 4
          %s298 = int_to_ptr.hbm [resolvable:$true] %s297
          %s299 = sshll.u32 [#allocation2], 4
          %s300 = int_to_ptr.vmem [resolvable:$true] %s299
          %302 = dma.hbm_to_vmem [thread:$0]  %s298, 16, %s300, [#allocation3]
        $region16: #{tpu_custom_call.1} parent=11 // pred_fallthru
          _
        // Predicated region
        $region17: #{tpu_custom_call.1} parent=11 // pred_check
          %p303 = pneg %p115
        $region18: #{tpu_custom_call.1} parent=11 // pred_check_branch
          %305 = sbr.rel (%p303) target = $region20
        $region19: #{tpu_custom_call.1} parent=11 // pred_region
          %307 = vsyncadd [#allocation6], 0
          %s308 = sshll.u32 %s2, 4
          %s309 = int_to_ptr.hbm [resolvable:$true] %s308
          %s310 = sshll.u32 [#allocation7], 4
          %s311 = int_to_ptr.vmem [resolvable:$true] %s310
          %316 = dma.hbm_to_vmem [thread:$0]  %s309, 512, %s311, [#allocation6], 128, 128, 8
        $region20: #{tpu_custom_call.1} parent=11 // pred_fallthru
          _
        // Predicated region
        $region21: #{tpu_custom_call.1} parent=11 // pred_check
          %p317 = pneg %p136
        $region22: #{tpu_custom_call.1} parent=11 // pred_check_branch
          %319 = sbr.rel (%p317) target = $region24
        $region23: #{tpu_custom_call.1} parent=11 // pred_region
          _
        $region24: #{tpu_custom_call.1} parent=11 // pred_fallthru
          _
        // Predicated region
        $region25: #{tpu_custom_call.1} parent=11 // pred_check
          %p320 = pneg %p157
        $region26: #{tpu_custom_call.1} parent=11 // pred_check_branch
          %322 = sbr.rel (%p320) target = $region28
        $region27: #{tpu_custom_call.1} parent=11 // pred_region
          %324 = vsyncadd [#allocation9], 0
          %s325 = sshll.u32 %s4, 4
          %s326 = int_to_ptr.hbm [resolvable:$true] %s325
          %s327 = sshll.u32 [#allocation8], 4
          %s328 = int_to_ptr.vmem [resolvable:$true] %s327
          %333 = dma.hbm_to_vmem [thread:$0]  %s326, 1024, %s328, [#allocation9], 128, 128, 8
        $region28: #{tpu_custom_call.1} parent=11 // pred_fallthru
          _
        // Predicated region
        $region29: #{tpu_custom_call.1} parent=11 // pred_check
          %p334 = pneg %p178
        $region30: #{tpu_custom_call.1} parent=11 // pred_check_branch
          %336 = sbr.rel (%p334) target = $region32
        $region31: #{tpu_custom_call.1} parent=11 // pred_region
          _
        $region32: #{tpu_custom_call.1} parent=11 // pred_fallthru
          _
        // Predicated region
        $region33: #{tpu_custom_call.1} parent=11 // pred_check
          %p337 = pneg %p199
        $region34: #{tpu_custom_call.1} parent=11 // pred_check_branch
          %339 = sbr.rel (%p337) target = $region36
        $region35: #{tpu_custom_call.1} parent=11 // pred_region
          %341 = vsyncadd [#allocation9], 0
          %s342 = sshll.u32 %s6, 4
          %s343 = int_to_ptr.hbm [resolvable:$true] %s342
          %s344 = sshll.u32 [#allocation10], 4
          %s345 = int_to_ptr.vmem [resolvable:$true] %s344
          %350 = dma.hbm_to_vmem [thread:$0]  %s343, 512, %s345, [#allocation9], 128, 128, 8
        $region36: #{tpu_custom_call.1} parent=11 // pred_fallthru
          _
        // Predicated region
        $region37: #{tpu_custom_call.1} parent=11 // pred_check
          %p351 = pneg %p220
        $region38: #{tpu_custom_call.1} parent=11 // pred_check_branch
          %353 = sbr.rel (%p351) target = $region40
        $region39: #{tpu_custom_call.1} parent=11 // pred_region
          _
        $region40: #{tpu_custom_call.1} parent=11 // pred_fallthru
          _
      $region12: #{tpu_custom_call.1} parent=5 // pred_fallthru
        _
      %p354 = scmp.lt.s32.totalorder %s27, 8
      // Predicated region
      $region41: #{tpu_custom_call.1} parent=5 // pred_check
        %p355 = pneg %p354
      $region42: #{tpu_custom_call.1} parent=5 // pred_check_branch
        %357 = sbr.rel (%p355) target = $region44
      $region43: #{tpu_custom_call.1} parent=5 // pred_region
        // Predicated region
        $region45: #{tpu_custom_call.1} parent=43 // pred_check
          %p358 = pneg %p88
        $region46: #{tpu_custom_call.1} parent=43 // pred_check_branch
          %360 = sbr.rel (%p358) target = $region48
        $region47: #{tpu_custom_call.1} parent=43 // pred_region
          %s361 = sand.u32 %s27, 1
          %s362 = scalar_lea.sflag [#allocation6], %s361
          %s363 = sand.u32 %s78, 1
          %s364 = smul.addr %s363, 2
          %s365 = scalar_lea.vmem [#allocation5], %s364
          %s366 = ssub.s32 %s34, 1
          %p367 = scmp.gt.s32.totalorder %s366, 0
          %s368 = scalar_select %p367, %s366, 0
          %370 = vsyncadd %s362, 0
          %s371 = sadd.s32 %s35, %s368
          %s372 = smul.addr %s371, 2
          %s373 = scalar_lea.hbm %s1, %s372
          %s375 = sshll.u32 %s373, 4
          %s376 = int_to_ptr.hbm [resolvable:$true] %s375
          %s377 = sshll.u32 %s365, 4
          %s378 = int_to_ptr.vmem [resolvable:$true] %s377
          %380 = dma.hbm_to_vmem [thread:$0]  %s376, 32, %s378, %s362
        $region48: #{tpu_custom_call.1} parent=43 // pred_fallthru
          _
      $region44: #{tpu_custom_call.1} parent=5 // pred_fallthru
        _
      %p381 = scmp.le.s32.totalorder 1, %s27
      %p382 = scmp.lt.s32.totalorder %s27, 9
      %p383 = pnand %p381, %p382
      %p384 = pneg %p383
      // Predicated region
      $region49: #{tpu_custom_call.1} parent=5 // pred_check
        _
      $region50: #{tpu_custom_call.1} parent=5 // pred_check_branch
        %386 = sbr.rel (%p383) target = $region52
      $region51: #{tpu_custom_call.1} parent=5 // pred_region
        %s387 = ssub.s32 %s27, 1
        // Predicated region
        $region53: #{tpu_custom_call.1} parent=51 // pred_check
          %p388 = pneg %p60
        $region54: #{tpu_custom_call.1} parent=51 // pred_check_branch
          %390 = sbr.rel (%p388) target = $region56
        $region55: #{tpu_custom_call.1} parent=51 // pred_region
          %392 = dma.done [#allocation3], 16
        $region56: #{tpu_custom_call.1} parent=51 // pred_fallthru
          _
        %s393 = sand.u32 %s32, 1
        %s394 = scalar_lea.sflag [#allocation6], %s393
        %s395 = sand.u32 %s81, 1
        %s396 = smul.addr %s395, 2
        %s397 = scalar_lea.vmem [#allocation5], %s396
        // Predicated region
        $region57: #{tpu_custom_call.1} parent=51 // pred_check
          %p398 = pneg %p94
        $region58: #{tpu_custom_call.1} parent=51 // pred_check_branch
          %400 = sbr.rel (%p398) target = $region60
        $region59: #{tpu_custom_call.1} parent=51 // pred_region
          %402 = dma.done %s394, 32
        $region60: #{tpu_custom_call.1} parent=51 // pred_fallthru
          _
        // Predicated region
        $region61: #{tpu_custom_call.1} parent=51 // pred_check
          %p403 = pneg %p115
        $region62: #{tpu_custom_call.1} parent=51 // pred_check_branch
          %405 = sbr.rel (%p403) target = $region64
        $region63: #{tpu_custom_call.1} parent=51 // pred_region
          %407 = dma.done [#allocation6], 512
        $region64: #{tpu_custom_call.1} parent=51 // pred_fallthru
          _
        // Predicated region
        $region65: #{tpu_custom_call.1} parent=51 // pred_check
          %p408 = pneg %p157
        $region66: #{tpu_custom_call.1} parent=51 // pred_check_branch
          %410 = sbr.rel (%p408) target = $region68
        $region67: #{tpu_custom_call.1} parent=51 // pred_region
          %412 = dma.done [#allocation9], 1024
        $region68: #{tpu_custom_call.1} parent=51 // pred_fallthru
          _
        // Predicated region
        $region69: #{tpu_custom_call.1} parent=51 // pred_check
          %p413 = pneg %p199
        $region70: #{tpu_custom_call.1} parent=51 // pred_check_branch
          %415 = sbr.rel (%p413) target = $region72
        $region71: #{tpu_custom_call.1} parent=51 // pred_region
          %417 = dma.done [#allocation9], 512
        $region72: #{tpu_custom_call.1} parent=51 // pred_fallthru
          _
        %p418 = pneg %p60
        %p419 = pneg %p57
        %s420 = sand.u32 %s32, 1
        %s421 = scalar_lea.sflag [#allocation6], %s420
        %s422 = sand.u32 %s81, 1
        %s423 = smul.addr %s422, 2
        %s424 = scalar_lea.vmem [#allocation5], %s423
        %p425 = pneg %p94
        %p426 = pneg %p91
        %p427 = pneg %p115
        %p428 = pneg %p112
        %p429 = pneg %p136
        %p430 = pneg %p133
        %p431 = pneg %p157
        %p432 = pneg %p154
        %p433 = pneg %p178
        %p434 = pneg %p175
        %p435 = pneg %p199
        %p436 = pneg %p196
        %p437 = pneg %p220
        %p438 = pneg %p217
        %p439 = pneg %p248
        %p440 = pneg %p245
        %s441 = sand.u32 %s235, 1
        %s442 = scalar_lea.sflag [#allocation4], %s441
        %s443 = sand.u32 %s235, 1
        %s444 = smul.addr %s443, 2
        %s445 = scalar_lea.vmem [#allocation11], %s444
        %p446 = pneg %p276
        %p447 = pneg %p273
        %s448 = sand.u32 %s263, 1
        %s449 = scalar_lea.sflag [#allocation13], %s448
        %s450 = sand.u32 %s263, 1
        %s451 = smul.addr %s450, 2
        %s452 = scalar_lea.vmem [#allocation12], %s451
        %s453 = ssub.s32 %s36, 1
        %p454 = scmp.gt.s32.totalorder %s453, 0
        %s455 = scalar_select %p454, %s453, 0
        %v456 = vld [vmem:[%s397] sm:$0x3]
        %v457 = vld [vmem:[#allocation2] sm:$0x1]
        %v459 = vperm.slane %v457, 0
        %p461 = scmp.eq.s32.totalorder %s36, 0
        %s462 = scalar_select %p461, 1, 0
        %v463 = vstv %s462
        %vm464 = vcmp.eq.s32.totalorder %v463, 1
        %v465 = vsel %vm464, %v459, %v456
        %v466 = vld [vmem:[#allocation7] sm:$0xff]
        %v467 = vld [vmem:[#allocation7 + $0x8] sm:$0xff]
        %v468 = vld [vmem:[#allocation7 + $0x10] sm:$0xff]
        %v469 = vld [vmem:[#allocation7 + $0x18] sm:$0xff]
        %v470 = vld [vmem:[%s3] sm:$0x1]
        %v472 = vperm.slane %v470, 0
        %vm474 = vcmask 261120
        %v476 = vsel %vm474, %v465, 0
        %478 = vmatpush.msra.mxu0 0.0
        %479 = vmatpush.msra.mxu0 0.0
        %480 = vmatpush.msra.mxu0 0.0
        %481 = vmatpush.msra.mxu0 0.0
        %482 = vmatpush.msra.mxu0 0.0
        %483 = vmatpush.msra.mxu0 0.0
        %484 = vmatpush.msra.mxu0 0.0
        %485 = vmatpush.msra.mxu0 0.0
        %486 = vmatpush.msra.mxu0 0.0
        %487 = vmatpush.msra.mxu0 0.0
        %488 = vmatpush.msra.mxu0 0.0
        %489 = vmatpush.msra.mxu0 0.0
        %490 = vmatpush.msra.mxu0 %v469
        %491 = vmatpush.msra.mxu0 %v468
        %492 = vmatpush.msra.mxu0 %v467
        %493 = vmatpush.msra.mxu0 %v466
        %494 = vmatmul.f32.gmra.mxu0 %v476
        %v495 = vpop.f32.mrf.mxu0
        %v496 = vadd.f32 %v472, %v495
        %497 = vdwg.mxu0
        %v498 = vmax.f32 %v496, 0.0
        %v499 = vld [vmem:[#allocation8] sm:$0xff]
        %v500 = vld [vmem:[#allocation8 + $0x8] sm:$0xff]
        %v501 = vld [vmem:[#allocation8 + $0x10] sm:$0xff]
        %v502 = vld [vmem:[#allocation8 + $0x18] sm:$0xff]
        %v503 = vld [vmem:[#allocation8 + $0x20] sm:$0xff]
        %v504 = vld [vmem:[#allocation8 + $0x28] sm:$0xff]
        %v505 = vld [vmem:[#allocation8 + $0x30] sm:$0xff]
        %v506 = vld [vmem:[#allocation8 + $0x38] sm:$0xff]
        %v507 = vld [vmem:[%s5] sm:$0x1]
        %v509 = vperm.slane %v507, 0
        %vm511 = vcmask 523264
        %v513 = vsel %vm511, %v498, 0
        %515 = vmatpush.msra.mxu0 0.0
        %516 = vmatpush.msra.mxu0 0.0
        %517 = vmatpush.msra.mxu0 0.0
        %518 = vmatpush.msra.mxu0 0.0
        %519 = vmatpush.msra.mxu0 0.0
        %520 = vmatpush.msra.mxu0 0.0
        %521 = vmatpush.msra.mxu0 0.0
        %522 = vmatpush.msra.mxu0 0.0
        %523 = vmatpush.msra.mxu0 %v506
        %524 = vmatpush.msra.mxu0 %v505
        %525 = vmatpush.msra.mxu0 %v504
        %526 = vmatpush.msra.mxu0 %v503
        %527 = vmatpush.msra.mxu0 %v502
        %528 = vmatpush.msra.mxu0 %v501
        %529 = vmatpush.msra.mxu0 %v500
        %530 = vmatpush.msra.mxu0 %v499
        %531 = vmatmul.f32.gmra.mxu0 %v513
        %v532 = vpop.f32.mrf.mxu0
        %v533 = vadd.f32 %v509, %v532
        %534 = vdwg.mxu0
        %v535 = vxor.u32 %v533, 2147483648
        %v536 = vmul.f32 %v535, 1.442695
        %v537 = vpow.pop %v536
        %v538 = vadd.f32 %v537, 1.0
        %v539 = vrcp.pop %v538
        %v540 = vmul.f32 %v538, %v539
        %v541 = vsub.f32 1.0, %v540
        %v542 = vmul.f32 %v539, %v541
        %v543 = vadd.f32 %v539, %v542
        %vm544 = vweird.f32 %v538
        %vm545 = vweird.f32 %v539
        %vm546 = vmor %vm544, %vm545
        %v547 = vsel %vm546, %v539, %v543
        %v548 = vand.u32 2147483647, %v538
        %vm549 = vcmp.eq.f32.partialorder %v548, 8.507059e+37
        %v550 = vand.u32 %v538, 2147483648
        %v551 = vor.u32 1.1754944e-38, %v550
        %v552 = vsel %vm549, %v551, %v547
        %v553 = vmul.f32 1.0, %v552
        %v554 = vsub.f32 1.0, %v553
        %556 = vrot.lane.b32.xlu0 %v496, 64
        %v557 = vpop.permute.xlu0 %556
        %v559 = vmul.f32 %v554, %v557
        %561 = vrot.lane.b32.xlu0 %v533, 96
        %v562 = vpop.permute.xlu0 %561
        %v564 = vmul.f32 %v553, %v562
        %v565 = vadd.f32 %v559, %v564
        %v566 = vmax.f32 %v533, 0.0
        %v567 = vld [vmem:[#allocation10] sm:$0xff]
        %v568 = vld [vmem:[#allocation10 + $0x8] sm:$0xff]
        %v569 = vld [vmem:[#allocation10 + $0x10] sm:$0xff]
        %v570 = vld [vmem:[#allocation10 + $0x18] sm:$0xff]
        %v571 = vld [vmem:[%s7] sm:$0x1]
        %v573 = vperm.slane %v571, 0
        %576 = vrot.lane.b32.xlu0 %v566, 96
        %v577 = vpop.permute.xlu0 %576
        %v578 = vsel %vm474, %v577, 0
        %580 = vmatpush.msra.mxu0 0.0
        %581 = vmatpush.msra.mxu0 0.0
        %582 = vmatpush.msra.mxu0 0.0
        %583 = vmatpush.msra.mxu0 0.0
        %584 = vmatpush.msra.mxu0 0.0
        %585 = vmatpush.msra.mxu0 0.0
        %586 = vmatpush.msra.mxu0 0.0
        %587 = vmatpush.msra.mxu0 0.0
        %588 = vmatpush.msra.mxu0 0.0
        %589 = vmatpush.msra.mxu0 0.0
        %590 = vmatpush.msra.mxu0 0.0
        %591 = vmatpush.msra.mxu0 0.0
        %592 = vmatpush.msra.mxu0 %v570
        %593 = vmatpush.msra.mxu0 %v569
        %594 = vmatpush.msra.mxu0 %v568
        %595 = vmatpush.msra.mxu0 %v567
        %596 = vmatmul.f32.gmra.mxu0 %v578
        %v597 = vpop.f32.mrf.mxu0
        %v598 = vadd.f32 %v573, %v597
        %599 = vdwg.mxu0
        %v600 = vmax.f32 %v598, 0.0
        %vm601 = vcmp.ne.f32.partialorder %v598, %v598
        %v602 = vadd.f32 %v598, 0.0
        %v603 = vand.u32 2147483647, %v598
        %v604 = vsub.f32 0.0, %v603
        %v605 = vmul.f32 %v604, 1.442695
        %v606 = vpow.pop %v605
        %v607 = vadd.f32 %v606, 1.0
        %v608 = vlog2.pop %v607
        %v609 = vmul.f32 %v608, 0.6931472
        %v610 = vmul.f32 -0.5, %v606
        %v611 = vadd.f32 %v610, 1.0
        %v612 = vmul.f32 %v611, %v606
        %v613 = vand.u32 2147483647, %v606
        %vm614 = vcmp.lt.f32.partialorder %v613, 0.0004427343
        %v615 = vsel %vm614, %v612, %v609
        %v616 = vadd.f32 %v600, %v615
        %v617 = vsel %vm601, %v602, %v616
        %vm618 = vcmask 254976
        %619 = vst.msk [vmem:[%s445] sm:$0x3] %vm618, %v565
        %620 = vst.msk [vmem:[%s452] sm:$0x3] %vm618, %v617
        %s621 = sand.u32 %s235, 1
        %s622 = scalar_lea.sflag [#allocation4], %s621
        %s623 = sand.u32 %s235, 1
        %s624 = smul.addr %s623, 2
        %s625 = scalar_lea.vmem [#allocation11], %s624
        %s626 = sand.u32 %s263, 1
        %s627 = scalar_lea.sflag [#allocation13], %s626
        %s628 = sand.u32 %s263, 1
        %s629 = smul.addr %s628, 2
        %s630 = scalar_lea.vmem [#allocation12], %s629
        // Predicated region
        $region73: #{tpu_custom_call.1} parent=51 // pred_check
          %p631 = pneg %p245
        $region74: #{tpu_custom_call.1} parent=51 // pred_check_branch
          %633 = sbr.rel (%p631) target = $region76
        $region75: #{tpu_custom_call.1} parent=51 // pred_region
          %635 = vsyncadd %s622, 0
          %s636 = sadd.s32 %s37, %s36
          %s637 = smul.addr %s636, 2
          %s638 = scalar_lea.hbm %s8, %s637
          %s640 = sshll.u32 %s625, 4
          %s641 = int_to_ptr.vmem [resolvable:$true] %s640
          %s642 = sshll.u32 %s638, 4
          %s643 = int_to_ptr.hbm [resolvable:$true] %s642
          %645 = dma.vmem_to_hbm [thread:$0]  %s641, 32, %s643, %s622
        $region76: #{tpu_custom_call.1} parent=51 // pred_fallthru
          _
        // Predicated region
        $region77: #{tpu_custom_call.1} parent=51 // pred_check
          %p646 = pneg %p273
        $region78: #{tpu_custom_call.1} parent=51 // pred_check_branch
          %648 = sbr.rel (%p646) target = $region80
        $region79: #{tpu_custom_call.1} parent=51 // pred_region
          %650 = vsyncadd %s627, 0
          %s651 = sadd.s32 %s37, %s36
          %s652 = smul.addr %s651, 2
          %s653 = scalar_lea.hbm %s9, %s652
          %s655 = sshll.u32 %s630, 4
          %s656 = int_to_ptr.vmem [resolvable:$true] %s655
          %s657 = sshll.u32 %s653, 4
          %s658 = int_to_ptr.hbm [resolvable:$true] %s657
          %660 = dma.vmem_to_hbm [thread:$0]  %s656, 32, %s658, %s627
        $region80: #{tpu_custom_call.1} parent=51 // pred_fallthru
          _
      $region52: #{tpu_custom_call.1} parent=5 // pred_fallthru
        _
      %p661 = scmp.le.s32.totalorder 2, %s27
      // Predicated region
      $region81: #{tpu_custom_call.1} parent=5 // pred_check
        %p662 = pneg %p661
      $region82: #{tpu_custom_call.1} parent=5 // pred_check_branch
        %664 = sbr.rel (%p662) target = $region84
      $region83: #{tpu_custom_call.1} parent=5 // pred_region
        %s665 = ssub.s32 %s27, 2
        // Predicated region
        $region85: #{tpu_custom_call.1} parent=83 // pred_check
          %p666 = pneg %p251
        $region86: #{tpu_custom_call.1} parent=83 // pred_check_branch
          %668 = sbr.rel (%p666) target = $region88
        $region87: #{tpu_custom_call.1} parent=83 // pred_region
          %s669 = sand.u32 %s236, 1
          %s670 = scalar_lea.sflag [#allocation4], %s669
          %s671 = sand.u32 %s236, 1
          %s672 = smul.addr %s671, 2
          %s673 = scalar_lea.vmem [#allocation11], %s672
          %675 = dma.done %s670, 32
        $region88: #{tpu_custom_call.1} parent=83 // pred_fallthru
          _
        // Predicated region
        $region89: #{tpu_custom_call.1} parent=83 // pred_check
          %p676 = pneg %p279
        $region90: #{tpu_custom_call.1} parent=83 // pred_check_branch
          %678 = sbr.rel (%p676) target = $region92
        $region91: #{tpu_custom_call.1} parent=83 // pred_region
          %s679 = sand.u32 %s264, 1
          %s680 = scalar_lea.sflag [#allocation13], %s679
          %s681 = sand.u32 %s264, 1
          %s682 = smul.addr %s681, 2
          %s683 = scalar_lea.vmem [#allocation12], %s682
          %685 = dma.done %s680, 32
        $region92: #{tpu_custom_call.1} parent=83 // pred_fallthru
          _
      $region84: #{tpu_custom_call.1} parent=5 // pred_fallthru
        _
    $region6: #{tpu_custom_call.1} parent=1 // loop_footer
      %s31 = sadd.s32 1, %s27
    $region7: #{tpu_custom_call.1} parent=1 // loop_footer_branch
      %26 = sbr.rel target = $region3
    $region8: #{tpu_custom_call.1} parent=1 // loop_exit
      _
    %686 = vsyncpa [#allocation3], 1
    %s687 = scalar_lea.sflag [#allocation3], 1
    %688 = vsyncpa %s687, 1
    %689 = vsyncpa [#allocation6], 1
    %s690 = scalar_lea.sflag [#allocation6], 1
    %691 = vsyncpa %s690, 1
    %692 = vsyncpa [#allocation9], 1
    %693 = vsyncpa [#allocation4], 1
    %s694 = scalar_lea.sflag [#allocation4], 1
    %695 = vsyncpa %s694, 1
    %696 = vsyncpa [#allocation13], 1
    %s697 = scalar_lea.sflag [#allocation13], 1
    %698 = vsyncpa %s697, 1

</llo_original>
